<compile_context>
chip_gen: v5e
topology: v5e:2x2
jax: 0.10.0
libtpu: 0.0.40
codegen_flags: <defaults>
</compile_context>

<pallas_src>
import jax
import jax.numpy as jnp
from jax.experimental import pallas as pl
from jax.experimental.pallas import tpu as pltpu


def _round_up(x: int, m: int) -> int:
    return (x + m - 1) // m * m


# ----------------------------------------------------------------------------
# Pallas kernel: o (C, tn) = weight (C, D) @ embeds_tile (D, tn)
# ----------------------------------------------------------------------------
def gfan_forward_kernel(w_ref, e_ref, o_ref):
    # w_ref: (C, D) weight, constant block index -> stays resident in VMEM
    # e_ref: (D, tn) embed-major tile (node axis on lanes, full occupancy)
    # o_ref: (C, tn) lane-dense output tile (node axis on lanes)
    o_ref[...] = jnp.dot(
        w_ref[...], e_ref[...], preferred_element_type=jnp.float32
    ).astype(o_ref.dtype)


def _pick_tn(n: int, *, max_tn: int = 32768, min_tn: int = 512) -> int:
    """Node-tile width.

    Large enough to amortize the ~0.35 us per-grid-step pipeline overhead
    against HBM DMA time, small enough to (a) leave several grid steps so the
    'parallel' axis can be split across v7x's two TensorCores and (b) keep the
    double-buffered VMEM footprint a few MiB on every generation."""
    n128 = _round_up(n, 128)
    if n128 <= min_tn:
        return n128
    tgt = _round_up(pl.cdiv(n128, 8), 128)   # aim for ~8 tiles at large N
    return int(max(min_tn, min(max_tn, tgt)))


def gfan_forward(weight, embeds_dn, *, tn=None, use_pallas=None,
                 compute_dtype=jnp.bfloat16):
    """GFANLayer.forward hot path.

    weight:    (num_classes, embed_dim) f32
    embeds_dn: (embed_dim, N) f32 — embed-major, exactly what inter1(nodes)
               returns in the PyTorch module.
    returns:   (N, num_classes) f32, identical to self.weight.mm(embeds1).t()
    """
    C, D = weight.shape
    D2, N = embeds_dn.shape
    assert D == D2

    if use_pallas is None:
        use_pallas = N >= 1024  # below this, launch overhead dominates
    if not use_pallas:
        return jnp.dot(weight, embeds_dn,
                       preferred_element_type=jnp.float32).T

    if tn is None:
        tn = _pick_tn(N)
    # Keep the node tile a multiple of 128 (lane-dense, unmasked stores except
    # on the final partial block) and no larger than the padded node count.
    tn = min(_round_up(tn, 128), _round_up(N, 128))

    # Halve the dominant HBM stream: bf16 inputs, f32 accumulation on the MXU.
    w = weight.astype(compute_dtype)
    e = embeds_dn.astype(compute_dtype)

    grid = (pl.cdiv(N, tn),)
    scores_cn = pl.pallas_call(
        gfan_forward_kernel,
        out_shape=jax.ShapeDtypeStruct((C, N), jnp.float32),
        grid=grid,
        in_specs=[
            # Weight: constant block index -> fetched once, resident in VMEM.
            pl.BlockSpec((C, D), lambda i: (0, 0)),
            # Embeddings: (D, tn) embed-major tiles marching over nodes.
            pl.BlockSpec((D, tn), lambda i: (0, i)),
        ],
        # Output: node axis last, tile a multiple of 128 -> lane-dense stores;
        # the partial final block is masked by Pallas.
        out_specs=pl.BlockSpec((C, tn), lambda i: (0, i)),
        compiler_params=pltpu.CompilerParams(
            # Independent node tiles: shard across TensorCores on v7x megacore.
            dimension_semantics=("parallel",),
        ),
    )(w, e)

    # Layout plumbing only (an (N, C=2) transpose is ~12% of output traffic and
    # fuses into the consumer under jit): return (N, C) like `scores.t()`.
    return scores_cn.T


# ----------------------------------------------------------------------------
# Glue: deterministic parameter / "inter1" setup (plain JAX)
# ----------------------------------------------------------------------------
def xavier_uniform(key, shape):
    # nn.init.xavier_uniform_ for a (fan_out, fan_in) weight
    fan_out, fan_in = shape
    bound = (6.0 / (fan_in + fan_out)) ** 0.5
    return jax.random.uniform(key, shape, jnp.float32, -bound, bound)


def make_inter1(key, embed_dim, total_nodes):
    """Stand-in for the inter-relation aggregator `inter1`.

    Matches the PyTorch contract: inter1(nodes) -> (embed_dim, len(nodes)),
    i.e. embed-major, which is exactly the layout the kernel consumes."""
    # TODO(synk): the real inter1 GNN aggregator is not defined in this module;
    # a deterministic embedding-table lookup is used as its stand-in.
    table = jax.random.normal(key, (embed_dim, total_nodes), jnp.float32)

    def inter1(nodes):
        return table[:, nodes]  # (embed_dim, N)

    return inter1


if __name__ == "__main__":
    num_classes = 2
    embed_dim = 32
    total_nodes = 64
    batch_nodes = 8

    key = jax.random.PRNGKey(0)
    k_w, k_emb, k_nodes, k_nodes2 = jax.random.split(key, 4)

    # GFANLayer parameters
    weight = xavier_uniform(k_w, (num_classes, embed_dim))

    # inter1 aggregator stand-in + a batch of node ids
    inter1 = make_inter1(k_emb, embed_dim, total_nodes)
    nodes = jax.random.randint(k_nodes, (batch_nodes,), 0, total_nodes)

    # forward(nodes): embeds1 = inter1(nodes); scores = W @ embeds1; return scores.t()
    embeds1 = inter1(nodes)                                   # (D, N)
    scores_t = gfan_forward(weight, embeds1, use_pallas=True)  # (N, C), force kernel
    scores_t = jax.block_until_ready(scores_t)

    # Reference with the same bf16 input rounding (kernel accumulates in f32).
    w_b = weight.astype(jnp.bfloat16).astype(jnp.float32)
    e_b = embeds1.astype(jnp.bfloat16).astype(jnp.float32)
    ref = (w_b @ e_b).T
    assert scores_t.shape == (batch_nodes, num_classes)
    assert jnp.allclose(scores_t, ref, atol=1e-3, rtol=1e-3)

    # Second check: non-multiple-of-128 batch with a multi-step grid
    # (exercises the masked partial last block, resident weight, parallel axis).
    n2 = 300
    nodes2 = jax.random.randint(k_nodes2, (n2,), 0, total_nodes)
    embeds2 = inter1(nodes2)                                   # (D, 300)
    scores2 = jax.block_until_ready(
        gfan_forward(weight, embeds2, tn=128, use_pallas=True))
    ref2 = (w_b @ embeds2.astype(jnp.bfloat16).astype(jnp.float32)).T
    assert scores2.shape == (n2, num_classes)
    assert jnp.allclose(scores2, ref2, atol=1e-3, rtol=1e-3)

    print("KERNEL_OK")
</pallas_src>

<mosaic_0001>
module attributes {stable_mosaic.version = 11 : i64} {
  func.func @gfan_forward_kernel(%arg0: i32, %arg1: memref<2x32xbf16, #tpu.memory_space<vmem>>, %arg2: memref<32x128xbf16, #tpu.memory_space<vmem>>, %arg3: memref<2x128xf32, #tpu.memory_space<vmem>>) attributes {dimension_semantics = [#tpu.dimension_semantics<parallel>], iteration_bounds = array<i64: 1>, scalar_prefetch = 0 : i64, scratch_operands = 0 : i64, tpu.core_type = #tpu.core_type<tc>, window_params = [{pipeline_mode = #tpu.pipeline_mode<synchronous>, transform_indices = @transform_0, window_bounds = array<i64: 2, 32>}, {transform_indices = @transform_1, window_bounds = array<i64: 32, 128>}, {transform_indices = @transform_2, window_bounds = array<i64: 2, 128>}]} {
    %c0 = arith.constant 0 : index
    %c0_0 = arith.constant 0 : index
    %0 = vector.load %arg1[%c0, %c0_0] : memref<2x32xbf16, #tpu.memory_space<vmem>>, vector<2x32xbf16>
    %c0_1 = arith.constant 0 : index
    %c0_2 = arith.constant 0 : index
    %1 = vector.load %arg2[%c0_1, %c0_2] : memref<32x128xbf16, #tpu.memory_space<vmem>>, vector<32x128xbf16>
    %cst = arith.constant dense<0.000000e+00> : vector<2x128xf32>
    %2 = tpu.matmul %0, %1, %cst {dimension_numbers = #tpu.dot_dimension_numbers<[1], [0], [0], [1], [0, 0, 1, 1], [], []>} : vector<2x32xbf16>, vector<32x128xbf16>, vector<2x128xf32> -> vector<2x128xf32>
    %c0_3 = arith.constant 0 : index
    %c0_4 = arith.constant 0 : index
    %3 = vector.load %arg3[%c0_3, %c0_4] : memref<2x128xf32, #tpu.memory_space<vmem>>, vector<2x128xf32>
    tpu.vector_store %arg3[%c0_3, %c0_4], %2 {strides = array<i32>} : memref<2x128xf32, #tpu.memory_space<vmem>>, vector<2x128xf32>,
    return
  }
  func.func @transform_0(%arg0: i32) -> (i32, i32) {
    %c0_i32 = arith.constant 0 : i32
    %c0_i32_0 = arith.constant 0 : i32
    %c0_i32_1 = arith.constant 0 : i32
    return %c0_i32, %c0_i32_0 : i32, i32
  }
  func.func @transform_1(%arg0: i32) -> (i32, i32) {
    %c0_i32 = arith.constant 0 : i32
    %c0_i32_0 = arith.constant 0 : i32
    return %c0_i32, %arg0 : i32, i32
  }
  func.func @transform_2(%arg0: i32) -> (i32, i32) {
    %c0_i32 = arith.constant 0 : i32
    %c0_i32_0 = arith.constant 0 : i32
    return %c0_i32, %arg0 : i32, i32
  }
}

</mosaic_0001>

<llo_original>
// kernel: tpu_custom_call.1
$region0: #{tpu_custom_call.1}
  #allocation0 [shape = 'u32[]', space=smem, size = 0x4, offset = 0x4, fixed_abs, tag = 'smem constant byte address 0x4 - core index']
  #allocation1 [shape = 'u32[72,128]{1,0:T(1,128)}', space=vmem, size = 0x9000, scoped, tag = 'internal scratch']
  %s0 = inlined_call_operand.vmem [shape: bf16[2,32], index: 0, kind: input, shape index: {}]
  %s1 = inlined_call_operand.vmem [shape: bf16[32,8], index: 1, kind: input, shape index: {}]
  %s2 = inlined_call_operand.hbm [shape: f32[2,8], index: 2, kind: output, shape index: {}]
  %s3 = sld [smem:[#allocation0]]
  $region18: #{tpu_custom_call.1} parent=0
    _
  %s5 = ssub.s32 1, %s3
  %s6 = scalar_select 0, %s5, %s3
  $region1: #{tpu_custom_call.1} parent=0
    #allocation2 [shape = 'u8[1024]{0}', space=vmem, size = 0x400, scoped, tag = 'output window, operand 0, single buffered']
    #allocation3 [shape = 's32[1]{0}', space=sflag, size = 0x4, scoped, tag = 'scoped memory for tpu_custom_call.1']
    %7 = vsyncpa [#allocation3], 0
    // Predicated region
    $region2: #{tpu_custom_call.1} parent=1 // pred_check
      _
    $region3: #{tpu_custom_call.1} parent=1 // pred_check_branch
      %9 = sbr.rel (0) target = $region5
    $region4: #{tpu_custom_call.1} parent=1 // pred_region
      _
    $region5: #{tpu_custom_call.1} parent=1 // pred_fallthru
      _
    // Predicated region
    $region6: #{tpu_custom_call.1} parent=1 // pred_check
      _
    $region7: #{tpu_custom_call.1} parent=1 // pred_check_branch
      %11 = sbr.rel (0) target = $region9
    $region8: #{tpu_custom_call.1} parent=1 // pred_region
      _
    $region9: #{tpu_custom_call.1} parent=1 // pred_fallthru
      _
    %v13 = vld [vmem:[%s0] sm:$0x1]
    %v14 = vld [vmem:[%s1] sm:$0xf]
    %v15 = vld [vmem:[%s1 + $0x4] sm:$0xf]
    %v16 = vld [vmem:[%s1 + $0x8] sm:$0xf]
    %v17 = vld [vmem:[%s1 + $0xc] sm:$0xf]
    %v22 = vunpack.c.l.b16 %v14
    %v23 = vunpack.c.l.b16 %v15
    %v24 = vunpack.c.l.b16 %v16
    %v25 = vunpack.c.l.b16 %v17
    %v26 = vpack.c.b16 %v23, %v22
    %v27 = vpack.c.b16 %v25, %v24
    %vm30 = vcmask 261120
    %v32 = vsel %vm30, %v13, 0
    %34 = vmatpush.bf16.msra.mxu0 0
    %35 = vmatpush.bf16.msra.mxu0 0
    %36 = vmatpush.bf16.msra.mxu0 0
    %37 = vmatpush.bf16.msra.mxu0 0
    %38 = vmatpush.bf16.msra.mxu0 0
    %39 = vmatpush.bf16.msra.mxu0 0
    %40 = vmatpush.bf16.msra.mxu0 %v27
    %41 = vmatpush.bf16.msra.mxu0 %v26
    %42 = vmatmul.bf16.gmra.mxu0 %v32
    %v43 = vpop.f32.mrf.mxu0
    %v44 = vadd.f32 0.0, %v43
    %v45 = vpop.f32.mrf.mxu0
    %46 = vdwg.mxu0
    %47 = vst [vmem:[#allocation2] sm:$0x3] %v44
    // Predicated region
    $region10: #{tpu_custom_call.1} parent=1 // pred_check
      _
    $region11: #{tpu_custom_call.1} parent=1 // pred_check_branch
      %49 = sbr.rel (0) target = $region13
    $region12: #{tpu_custom_call.1} parent=1 // pred_region
      %51 = vsyncadd [#allocation3], 0
      %s53 = sshll.u32 [#allocation2], 4
      %s54 = int_to_ptr.vmem [resolvable:$true] %s53
      %s55 = sshll.u32 %s2, 4
      %s56 = int_to_ptr.hbm [resolvable:$true] %s55
      %58 = dma.vmem_to_hbm [thread:$0]  %s54, 32, %s56, [#allocation3]
    $region13: #{tpu_custom_call.1} parent=1 // pred_fallthru
      _
    // Predicated region
    $region14: #{tpu_custom_call.1} parent=1 // pred_check
      _
    $region15: #{tpu_custom_call.1} parent=1 // pred_check_branch
      %60 = sbr.rel (0) target = $region17
    $region16: #{tpu_custom_call.1} parent=1 // pred_region
      %62 = dma.done [#allocation3], 32
    $region17: #{tpu_custom_call.1} parent=1 // pred_fallthru
      _
    %63 = vsyncpa [#allocation3], 1

</llo_original>
